<compile_context>
chip_gen: v5e
topology: v5e:2x2
jax: 0.10.0
libtpu: 0.0.40
codegen_flags: <defaults>
</compile_context>

<pallas_src>
import jax
import jax.numpy as jnp
from jax.experimental import pallas as pl
from jax.experimental.pallas import tpu as pltpu

LANE = 128
_X_TILE_TARGET_BYTES = 4 << 20   # ~4 MiB x-tile: measured >=85% of HBM roofline


def _residual_conv1x1_kernel(x_ref, w_ref, b_ref, o_ref):
    """out = W @ x + bias + x  for one (C, TL) tile (fused fn(x) + x)."""
    x = x_ref[...]                                       # (C, TL), L on lanes
    y = jnp.dot(w_ref[...], x,                           # MXU: 1x1 conv
                preferred_element_type=jnp.float32)      # f32 accumulation
    y = y + b_ref[...]                                    # (C, 1) bcast over lanes
    o_ref[...] = (y + x.astype(jnp.float32)).astype(o_ref.dtype)


def _vmem_capacity_bytes():
    """Physical VMEM per TensorCore; conservative fallback = v7x (64 MiB)."""
    try:
        cap = getattr(pltpu.get_tpu_info(), "vmem_capacity_bytes", None)
        if cap:
            return int(cap)
    except Exception:
        pass
    return 64 * 1024 * 1024


def _auto_l_tile(C, L, itemsize, vmem_budget):
    """Largest lane-dense L tile within the VMEM budget / ~4 MiB target."""
    w_bytes = C * C * itemsize + C * itemsize
    # double-buffered in + out tiles cost 4 * C * tl * itemsize bytes
    by_budget = max(LANE, (vmem_budget - w_bytes) // (4 * C * itemsize))
    by_target = max(LANE, _X_TILE_TARGET_BYTES // (C * itemsize))
    tl = min(by_budget, by_target)
    tl = max(LANE, (tl // LANE) * LANE)
    if tl >= L:
        return L                      # whole-L slab: grid collapses to (B,)
    return tl


def residual_conv1x1(x_ncl, weight, bias, l_tile=None, in_place=False):
    """
    x_ncl : (B, C, L)            -- PyTorch NCL layout, kept native
    weight: (C_out, C_in, 1)     -- nn.Conv1d weight
    bias  : (C_out,)             -- nn.Conv1d bias
    returns (B, C, L) == Conv1d(x) + x
    """
    B, C, L = x_ncl.shape
    w = weight[:, :, 0]                                   # (C_out, C_in)
    b_col = bias.reshape(C, 1)                            # column, bcast over lanes
    itemsize = jnp.dtype(x_ncl.dtype).itemsize

    vmem_cap = _vmem_capacity_bytes()
    budget = vmem_cap // 2            # pipeline working set < half of physical

    if l_tile is None:
        tl = _auto_l_tile(C, L, itemsize, budget)
    else:
        tl = min(l_tile, L)
        if tl != L and tl % LANE != 0:
            tl = L

    nl = pl.cdiv(L, tl)
    # v7x megacore: guarantee >= 2 grid steps along a "parallel" axis.
    if B == 1 and nl == 1 and L >= 2 * LANE and L % (2 * LANE) == 0:
        tl = L // 2
        nl = 2

    working_set = 4 * C * tl * itemsize + C * C * itemsize + C * itemsize
    vmem_limit = int(min(vmem_cap * 3 // 4,
                         max(working_set + (8 << 20), 32 << 20)))

    cost = pl.CostEstimate(
        flops=2 * B * C * C * L + 2 * B * C * L,           # matmul + bias + residual
        transcendentals=0,
        bytes_accessed=2 * B * C * L * itemsize + C * C * itemsize + C * itemsize,
    )

    common = dict(
        out_shape=jax.ShapeDtypeStruct((B, C, L), x_ncl.dtype),
        compiler_params=pltpu.CompilerParams(
            dimension_semantics=(("parallel",) if nl == 1
                                 else ("parallel", "parallel")),
            vmem_limit_bytes=vmem_limit),
        cost_estimate=cost,
        input_output_aliases=({0: 0} if in_place else {}),
    )

    if nl == 1:
        # Whole (C, L) slab per batch: one contiguous DMA, grid = (B,).
        call = pl.pallas_call(
            _residual_conv1x1_kernel,
            grid=(B,),
            in_specs=[
                pl.BlockSpec((None, C, L), lambda b: (b, 0, 0)),   # x slab
                pl.BlockSpec((C, C), lambda b: (0, 0)),            # W (resident)
                pl.BlockSpec((C, 1), lambda b: (0, 0)),            # bias column
            ],
            out_specs=pl.BlockSpec((None, C, L), lambda b: (b, 0, 0)),
            **common,
        )
    else:
        # (B, L-tiles) grid: double-buffered, lane-dense tiles.
        call = pl.pallas_call(
            _residual_conv1x1_kernel,
            grid=(B, nl),
            in_specs=[
                pl.BlockSpec((None, C, tl), lambda b, l: (b, 0, l)),
                pl.BlockSpec((C, C), lambda b, l: (0, 0)),
                pl.BlockSpec((C, 1), lambda b, l: (0, 0)),
            ],
            out_specs=pl.BlockSpec((None, C, tl), lambda b, l: (b, 0, l)),
            **common,
        )
    return call(x_ncl, w, b_col)


if __name__ == "__main__":
    key = jax.random.PRNGKey(0)
    kx, kw, kb = jax.random.split(key, 3)

    def ref_fn(x, weight, bias):
        return (jnp.einsum("oi,bil->bol", weight[:, :, 0], x)
                + bias[None, :, None] + x)

    # Case 1: auto tiling -> whole-L slab per batch, grid = (B,)
    B, C, L = 2, 32, 256
    x = jax.random.normal(kx, (B, C, L), dtype=jnp.float32)
    weight = (jax.random.normal(kw, (C, C, 1), dtype=jnp.float32)
              * (1.0 / jnp.sqrt(C)))
    bias = jax.random.normal(kb, (C,), dtype=jnp.float32) * 0.01

    out = residual_conv1x1(x, weight, bias)
    jax.block_until_ready(out)
    assert out.shape == (B, C, L)
    assert jnp.allclose(out, ref_fn(x, weight, bias), atol=1e-4, rtol=1e-4)

    # Case 2: explicit l_tile exercises the (B, L-tiles) pipelined path
    out_t = residual_conv1x1(x, weight, bias, l_tile=128)
    jax.block_until_ready(out_t)
    assert jnp.allclose(out_t, ref_fn(x, weight, bias), atol=1e-4, rtol=1e-4)

    # Case 3: B == 1 -> L split in half so both v7x TensorCores get work
    x1 = jax.random.normal(kx, (1, C, 512), dtype=jnp.float32)
    out1 = residual_conv1x1(x1, weight, bias)
    jax.block_until_ready(out1)
    assert jnp.allclose(out1, ref_fn(x1, weight, bias), atol=1e-4, rtol=1e-4)

    print("KERNEL_OK")
</pallas_src>

<mosaic_0001>
module attributes {stable_mosaic.version = 11 : i64} {
  func.func @_residual_conv1x1_kernel(%arg0: i32, %arg1: memref<1x32x256xf32, #tpu.memory_space<vmem>>, %arg2: memref<32x32xf32, #tpu.memory_space<vmem>>, %arg3: memref<32x1xf32, #tpu.memory_space<vmem>>, %arg4: memref<1x32x256xf32, #tpu.memory_space<vmem>>) attributes {dimension_semantics = [#tpu.dimension_semantics<parallel>], iteration_bounds = array<i64: 2>, scalar_prefetch = 0 : i64, scratch_operands = 0 : i64, tpu.core_type = #tpu.core_type<tc>, window_params = [{transform_indices = @transform_0, window_bounds = array<i64: 1, 32, 256>}, {pipeline_mode = #tpu.pipeline_mode<synchronous>, transform_indices = @transform_1, window_bounds = array<i64: 32, 32>}, {pipeline_mode = #tpu.pipeline_mode<synchronous>, transform_indices = @transform_2, window_bounds = array<i64: 32, 1>}, {transform_indices = @transform_3, window_bounds = array<i64: 1, 32, 256>}]} {
    %c0 = arith.constant 0 : index
    %c0_0 = arith.constant 0 : index
    %c0_1 = arith.constant 0 : index
    %0 = vector.load %arg1[%c0, %c0_0, %c0_1] : memref<1x32x256xf32, #tpu.memory_space<vmem>>, vector<1x32x256xf32>
    %1 = vector.shape_cast %0 : vector<1x32x256xf32> to vector<32x256xf32>
    %c0_2 = arith.constant 0 : index
    %c0_3 = arith.constant 0 : index
    %2 = vector.load %arg2[%c0_2, %c0_3] : memref<32x32xf32, #tpu.memory_space<vmem>>, vector<32x32xf32>
    %cst = arith.constant dense<0.000000e+00> : vector<32x256xf32>
    %3 = tpu.matmul %2, %1, %cst {dimension_numbers = #tpu.dot_dimension_numbers<[1], [0], [0], [1], [0, 0, 1, 1], [], []>} : vector<32x32xf32>, vector<32x256xf32>, vector<32x256xf32> -> vector<32x256xf32>
    %c0_4 = arith.constant 0 : index
    %c0_5 = arith.constant 0 : index
    %4 = vector.load %arg3[%c0_4, %c0_5] : memref<32x1xf32, #tpu.memory_space<vmem>>, vector<32x1xf32>
    %5 = vector.broadcast %4 : vector<32x1xf32> to vector<32x256xf32>
    %6 = arith.addf %3, %5 : vector<32x256xf32>
    %7 = arith.addf %6, %1 : vector<32x256xf32>
    %c0_6 = arith.constant 0 : index
    %c0_7 = arith.constant 0 : index
    %c0_8 = arith.constant 0 : index
    %8 = vector.load %arg4[%c0_6, %c0_7, %c0_8] : memref<1x32x256xf32, #tpu.memory_space<vmem>>, vector<1x32x256xf32>
    %9 = vector.shape_cast %8 : vector<1x32x256xf32> to vector<32x256xf32>
    %10 = vector.shape_cast %7 : vector<32x256xf32> to vector<1x32x256xf32>
    tpu.vector_store %arg4[%c0_6, %c0_7, %c0_8], %10 {strides = array<i32>} : memref<1x32x256xf32, #tpu.memory_space<vmem>>, vector<1x32x256xf32>,
    return
  }
  func.func @transform_0(%arg0: i32) -> (i32, i32, i32) {
    %c0_i32 = arith.constant 0 : i32
    %c0_i32_0 = arith.constant 0 : i32
    %c0_i32_1 = arith.constant 0 : i32
    return %arg0, %c0_i32, %c0_i32_0 : i32, i32, i32
  }
  func.func @transform_1(%arg0: i32) -> (i32, i32) {
    %c0_i32 = arith.constant 0 : i32
    %c0_i32_0 = arith.constant 0 : i32
    %c0_i32_1 = arith.constant 0 : i32
    return %c0_i32, %c0_i32_0 : i32, i32
  }
  func.func @transform_2(%arg0: i32) -> (i32, i32) {
    %c0_i32 = arith.constant 0 : i32
    %c0_i32_0 = arith.constant 0 : i32
    %c0_i32_1 = arith.constant 0 : i32
    return %c0_i32, %c0_i32_0 : i32, i32
  }
  func.func @transform_3(%arg0: i32) -> (i32, i32, i32) {
    %c0_i32 = arith.constant 0 : i32
    %c0_i32_0 = arith.constant 0 : i32
    %c0_i32_1 = arith.constant 0 : i32
    return %arg0, %c0_i32, %c0_i32_0 : i32, i32, i32
  }
}

</mosaic_0001>

<llo_original>
// kernel: tpu_custom_call.1
$region0: #{tpu_custom_call.1}
  #allocation0 [shape = 'u32[]', space=smem, size = 0x4, offset = 0x4, fixed_abs, tag = 'smem constant byte address 0x4 - core index']
  #allocation1 [shape = 'u32[72,128]{1,0:T(1,128)}', space=vmem, size = 0x9000, scoped, tag = 'internal scratch']
  %s0 = inlined_call_operand.hbm [shape: f32[2,32,256], index: 0, kind: input, shape index: {}]
  %s1 = inlined_call_operand.vmem [shape: f32[32,32], index: 1, kind: input, shape index: {}]
  %s2 = inlined_call_operand.vmem [shape: f32[32,1], index: 2, kind: input, shape index: {}]
  %s3 = inlined_call_operand.hbm [shape: f32[2,32,256], index: 3, kind: output, shape index: {}]
  %s4 = sld [smem:[#allocation0]]
  $region49: #{tpu_custom_call.1} parent=0
    _
  %s6 = ssub.s32 1, %s4
  %s7 = scalar_select 0, %s6, %s4
  $region1: #{tpu_custom_call.1} parent=0
    #allocation2 [shape = 'u8[65536]{0}', space=vmem, size = 0x10000, scoped, tag = 'input window, operand 0']
    #allocation3 [shape = 's32[2]{0}', space=sflag, size = 0x8, scoped, tag = 'scoped memory for tpu_custom_call.1']
    #allocation4 [shape = 's32[2]{0}', space=sflag, size = 0x8, scoped, tag = 'scoped memory for tpu_custom_call.1']
    #allocation5 [shape = 'u8[65536]{0}', space=vmem, size = 0x10000, scoped, tag = 'output window, operand 0']
    %8 = vsyncpa [#allocation3], 0
    %s9 = scalar_lea.sflag [#allocation3], 1
    %10 = vsyncpa %s9, 0
    %11 = vsyncpa [#allocation4], 0
    %s12 = scalar_lea.sflag [#allocation4], 1
    %13 = vsyncpa %s12, 0
    loop: start=0, step=1, limit=4
    $region2: #{tpu_custom_call.1} parent=1 // loop_pre_header
      _
    $region3: #{tpu_custom_call.1} parent=1 // loop_header
      %s15 = sphi 0, %s19
      %p16 = scmp.ge.s32.totalorder %s15, 4
      %s25 = sphi 0, %s27
      %s28 = sphi 0, %s25
      %s29 = sphi 0, %s28
      %s45 = sphi 0, %s29
      %s49 = sphi 0, %s49
      %s51 = sphi 0, %s49
      %s52 = sphi 0, %s51
      %s66 = sphi 0, %s52
      %s70 = sphi 0, %s70
      %s72 = sphi 0, %s70
      %s73 = sphi 0, %s72
      %s87 = sphi 0, %s73
      %s93 = sphi 0, %s95
      %s96 = sphi 0, %s93
      %s97 = sphi 0, %s96
      %s113 = sphi 0, %s97
    $region4: #{tpu_custom_call.1} parent=1 // loop_header_branch
      %18 = sbr.rel (%p16) target = $region8
    $region5: #{tpu_custom_call.1} parent=1 // loop_body
      %s20 = ssub.s32 %s15, 1
      %s21 = ssub.s32 %s15, 2
      %s22 = sadd.s32 %s15, 1
      %s23 = ssub.s32 %s15, %s22
      %p24 = scmp.eq.s32.totalorder %s23, 0
      %s26 = sadd.s32 %s25, 1
      %s27 = scalar_select %p24, %s25, %s26
      %p30 = pneg %p24
      %p31 = scmp.eq.s32.totalorder %s15, 1
      %p32 = por %p30, %p31
      %p33 = scmp.ne.s32.totalorder %s25, %s28
      %p34 = scmp.eq.s32.totalorder %s15, 0
      %p35 = por %p33, %p34
      %p36 = scmp.ne.s32.totalorder %s25, %s28
      %p37 = scmp.eq.s32.totalorder %s20, 1
      %p38 = por %p36, %p37
      %p39 = scmp.ne.s32.totalorder %s28, %s29
      %p40 = scmp.eq.s32.totalorder %s20, 0
      %p41 = por %p39, %p40
      %p42 = scmp.ne.s32.totalorder %s28, %s29
      %p43 = scmp.eq.s32.totalorder %s21, 1
      %p44 = por %p42, %p43
      %p46 = scmp.ne.s32.totalorder %s29, %s45
      %p47 = scmp.eq.s32.totalorder %s21, 0
      %p48 = por %p46, %p47
      %s50 = sadd.s32 %s49, 1
      %p53 = scmp.eq.s32.totalorder %s15, 1
      %p54 = scmp.ne.s32.totalorder %s49, %s51
      %p55 = scmp.eq.s32.totalorder %s15, 0
      %p56 = por %p54, %p55
      %p57 = scmp.ne.s32.totalorder %s49, %s51
      %p58 = scmp.eq.s32.totalorder %s20, 1
      %p59 = por %p57, %p58
      %p60 = scmp.ne.s32.totalorder %s51, %s52
      %p61 = scmp.eq.s32.totalorder %s20, 0
      %p62 = por %p60, %p61
      %p63 = scmp.ne.s32.totalorder %s51, %s52
      %p64 = scmp.eq.s32.totalorder %s21, 1
      %p65 = por %p63, %p64
      %p67 = scmp.ne.s32.totalorder %s52, %s66
      %p68 = scmp.eq.s32.totalorder %s21, 0
      %p69 = por %p67, %p68
      %s71 = sadd.s32 %s70, 1
      %p74 = scmp.eq.s32.totalorder %s15, 1
      %p75 = scmp.ne.s32.totalorder %s70, %s72
      %p76 = scmp.eq.s32.totalorder %s15, 0
      %p77 = por %p75, %p76
      %p78 = scmp.ne.s32.totalorder %s70, %s72
      %p79 = scmp.eq.s32.totalorder %s20, 1
      %p80 = por %p78, %p79
      %p81 = scmp.ne.s32.totalorder %s72, %s73
      %p82 = scmp.eq.s32.totalorder %s20, 0
      %p83 = por %p81, %p82
      %p84 = scmp.ne.s32.totalorder %s72, %s73
      %p85 = scmp.eq.s32.totalorder %s21, 1
      %p86 = por %p84, %p85
      %p88 = scmp.ne.s32.totalorder %s73, %s87
      %p89 = scmp.eq.s32.totalorder %s21, 0
      %p90 = por %p88, %p89
      %s91 = ssub.s32 %s15, %s22
      %p92 = scmp.eq.s32.totalorder %s91, 0
      %s94 = sadd.s32 %s93, 1
      %s95 = scalar_select %p92, %s93, %s94
      %p98 = pneg %p92
      %p99 = scmp.eq.s32.totalorder %s15, 1
      %p100 = por %p98, %p99
      %p101 = scmp.ne.s32.totalorder %s93, %s96
      %p102 = scmp.eq.s32.totalorder %s15, 0
      %p103 = por %p101, %p102
      %p104 = scmp.ne.s32.totalorder %s93, %s96
      %p105 = scmp.eq.s32.totalorder %s20, 1
      %p106 = por %p104, %p105
      %p107 = scmp.ne.s32.totalorder %s96, %s97
      %p108 = scmp.eq.s32.totalorder %s20, 0
      %p109 = por %p107, %p108
      %p110 = scmp.ne.s32.totalorder %s96, %s97
      %p111 = scmp.eq.s32.totalorder %s21, 1
      %p112 = por %p110, %p111
      %p114 = scmp.ne.s32.totalorder %s97, %s113
      %p115 = scmp.eq.s32.totalorder %s21, 0
      %p116 = por %p114, %p115
      %p117 = scmp.le.s32.totalorder 1, %s15
      %p118 = scmp.lt.s32.totalorder %s15, 3
      %p119 = pnand %p117, %p118
      %p120 = pneg %p119
      // Predicated region
      $region9: #{tpu_custom_call.1} parent=5 // pred_check
        _
      $region10: #{tpu_custom_call.1} parent=5 // pred_check_branch
        %122 = sbr.rel (%p119) target = $region12
      $region11: #{tpu_custom_call.1} parent=5 // pred_region
        %s123 = ssub.s32 %s15, 1
        // Predicated region
        $region13: #{tpu_custom_call.1} parent=11 // pred_check
          %p124 = pneg %p62
        $region14: #{tpu_custom_call.1} parent=11 // pred_check_branch
          %126 = sbr.rel (%p124) target = $region16
        $region15: #{tpu_custom_call.1} parent=11 // pred_region
          _
        $region16: #{tpu_custom_call.1} parent=11 // pred_fallthru
          _
        // Predicated region
        $region17: #{tpu_custom_call.1} parent=11 // pred_check
          %p127 = pneg %p83
        $region18: #{tpu_custom_call.1} parent=11 // pred_check_branch
          %129 = sbr.rel (%p127) target = $region20
        $region19: #{tpu_custom_call.1} parent=11 // pred_region
          _
        $region20: #{tpu_custom_call.1} parent=11 // pred_fallthru
          _
      $region12: #{tpu_custom_call.1} parent=5 // pred_fallthru
        _
      %p130 = scmp.lt.s32.totalorder %s15, 2
      // Predicated region
      $region21: #{tpu_custom_call.1} parent=5 // pred_check
        %p131 = pneg %p130
      $region22: #{tpu_custom_call.1} parent=5 // pred_check_branch
        %133 = sbr.rel (%p131) target = $region24
      $region23: #{tpu_custom_call.1} parent=5 // pred_region
        // Predicated region
        $region25: #{tpu_custom_call.1} parent=23 // pred_check
          %p134 = pneg %p35
        $region26: #{tpu_custom_call.1} parent=23 // pred_check_branch
          %136 = sbr.rel (%p134) target = $region28
        $region27: #{tpu_custom_call.1} parent=23 // pred_region
          %s137 = sand.u32 %s25, 1
          %s138 = scalar_lea.sflag [#allocation3], %s137
          %s139 = sand.u32 %s25, 1
          %s140 = smul.addr %s139, 64
          %s141 = scalar_lea.vmem [#allocation2], %s140
          %143 = vsyncadd %s138, 0
          %s144 = smul.addr %s15, 8
          %s145 = smul.addr %s144, 8
          %s146 = scalar_lea.hbm %s0, %s145
          %s147 = sshll.u32 %s146, 4
          %s148 = int_to_ptr.hbm [resolvable:$true] %s147
          %s149 = sshll.u32 %s141, 4
          %s150 = int_to_ptr.vmem [resolvable:$true] %s149
          %155 = dma.hbm_to_vmem [thread:$0]  %s148, 1024, %s150, %s138, 256, 256, 16
        $region28: #{tpu_custom_call.1} parent=23 // pred_fallthru
          _
      $region24: #{tpu_custom_call.1} parent=5 // pred_fallthru
        _
      %p156 = scmp.le.s32.totalorder 1, %s15
      %p157 = scmp.lt.s32.totalorder %s15, 3
      %p158 = pnand %p156, %p157
      %p159 = pneg %p158
      // Predicated region
      $region29: #{tpu_custom_call.1} parent=5 // pred_check
        _
      $region30: #{tpu_custom_call.1} parent=5 // pred_check_branch
        %161 = sbr.rel (%p158) target = $region32
      $region31: #{tpu_custom_call.1} parent=5 // pred_region
        %s162 = ssub.s32 %s15, 1
        %s163 = sand.u32 %s28, 1
        %s164 = scalar_lea.sflag [#allocation3], %s163
        %s165 = sand.u32 %s28, 1
        %s166 = smul.addr %s165, 64
        %s167 = scalar_lea.vmem [#allocation2], %s166
        // Predicated region
        $region33: #{tpu_custom_call.1} parent=31 // pred_check
          %p168 = pneg %p41
        $region34: #{tpu_custom_call.1} parent=31 // pred_check_branch
          %170 = sbr.rel (%p168) target = $region36
        $region35: #{tpu_custom_call.1} parent=31 // pred_region
          %172 = dma.done %s164, 1024
        $region36: #{tpu_custom_call.1} parent=31 // pred_fallthru
          _
        %s173 = sand.u32 %s28, 1
        %s174 = scalar_lea.sflag [#allocation3], %s173
        %s175 = sand.u32 %s28, 1
        %s176 = smul.addr %s175, 64
        %s177 = scalar_lea.vmem [#allocation2], %s176
        %p178 = pneg %p41
        %p179 = pneg %p38
        %p180 = pneg %p62
        %p181 = pneg %p59
        %p182 = pneg %p83
        %p183 = pneg %p80
        %p184 = pneg %p109
        %p185 = pneg %p106
        %s186 = sand.u32 %s96, 1
        %s187 = scalar_lea.sflag [#allocation4], %s186
        %s188 = sand.u32 %s96, 1
        %s189 = smul.addr %s188, 64
        %s190 = scalar_lea.vmem [#allocation5], %s189
        %v191 = vld [vmem:[%s167] sm:$0xff]
        %v192 = vld [vmem:[%s167 + $0x8] sm:$0xff]
        %v193 = vld [vmem:[%s167 + $0x10] sm:$0xff]
        %v194 = vld [vmem:[%s167 + $0x18] sm:$0xff]
        %v195 = vld [vmem:[%s167 + $0x20] sm:$0xff]
        %v196 = vld [vmem:[%s167 + $0x28] sm:$0xff]
        %v197 = vld [vmem:[%s167 + $0x30] sm:$0xff]
        %v198 = vld [vmem:[%s167 + $0x38] sm:$0xff]
        %v199 = vld [vmem:[%s1] sm:$0xff]
        %v200 = vld [vmem:[%s1 + $0x8] sm:$0xff]
        %v201 = vld [vmem:[%s1 + $0x10] sm:$0xff]
        %v202 = vld [vmem:[%s1 + $0x18] sm:$0xff]
        %v203 = vld [vmem:[%s2] sm:$0xff]
        %v204 = vld [vmem:[%s2 + $0x8] sm:$0xff]
        %v205 = vld [vmem:[%s2 + $0x10] sm:$0xff]
        %v206 = vld [vmem:[%s2 + $0x18] sm:$0xff]
        %208 = vset.pattern.permute.xlu0 0
        %209 = vperm.xlu0 %208, %v203
        %v210 = vpop.permute.xlu0 %209
        %213 = vset.pattern.permute.xlu0 0
        %214 = vperm.xlu0 %213, %v204
        %v215 = vpop.permute.xlu0 %214
        %218 = vset.pattern.permute.xlu0 0
        %219 = vperm.xlu0 %218, %v205
        %v220 = vpop.permute.xlu0 %219
        %223 = vset.pattern.permute.xlu0 0
        %224 = vperm.xlu0 %223, %v206
        %v225 = vpop.permute.xlu0 %224
        %vm227 = vcmask 261120
        %v229 = vsel %vm227, %v199, 0
        %v232 = vsel %vm227, %v200, 0
        %v235 = vsel %vm227, %v201, 0
        %v238 = vsel %vm227, %v202, 0
        %240 = vmatpush.msra.mxu0 0.0
        %241 = vmatpush.msra.mxu0 0.0
        %242 = vmatpush.msra.mxu0 0.0
        %243 = vmatpush.msra.mxu0 0.0
        %244 = vmatpush.msra.mxu0 0.0
        %245 = vmatpush.msra.mxu0 0.0
        %246 = vmatpush.msra.mxu0 0.0
        %247 = vmatpush.msra.mxu0 0.0
        %248 = vmatpush.msra.mxu0 0.0
        %249 = vmatpush.msra.mxu0 0.0
        %250 = vmatpush.msra.mxu0 0.0
        %251 = vmatpush.msra.mxu0 0.0
        %252 = vmatpush.msra.mxu0 %v197
        %253 = vmatpush.msra.mxu0 %v195
        %254 = vmatpush.msra.mxu0 %v193
        %255 = vmatpush.msra.mxu0 %v191
        %256 = vmatmul.f32.gmra.mxu0 %v229
        %v257 = vpop.f32.mrf.mxu0
        %v258 = vadd.f32 %v210, %v257
        %259 = vmatmul.f32.gmra.mxu0 %v232
        %v260 = vpop.f32.mrf.mxu0
        %v261 = vadd.f32 %v215, %v260
        %262 = vmatmul.f32.gmra.mxu0 %v235
        %v263 = vpop.f32.mrf.mxu0
        %v264 = vadd.f32 %v220, %v263
        %265 = vmatmul.f32.gmra.mxu0 %v238
        %v266 = vpop.f32.mrf.mxu0
        %v267 = vadd.f32 %v225, %v266
        %268 = vdwg.mxu0
        %269 = vmatpush.msra.mxu0 0.0
        %270 = vmatpush.msra.mxu0 0.0
        %271 = vmatpush.msra.mxu0 0.0
        %272 = vmatpush.msra.mxu0 0.0
        %273 = vmatpush.msra.mxu0 0.0
        %274 = vmatpush.msra.mxu0 0.0
        %275 = vmatpush.msra.mxu0 0.0
        %276 = vmatpush.msra.mxu0 0.0
        %277 = vmatpush.msra.mxu0 0.0
        %278 = vmatpush.msra.mxu0 0.0
        %279 = vmatpush.msra.mxu0 0.0
        %280 = vmatpush.msra.mxu0 0.0
        %281 = vmatpush.msra.mxu0 %v198
        %282 = vmatpush.msra.mxu0 %v196
        %283 = vmatpush.msra.mxu0 %v194
        %284 = vmatpush.msra.mxu0 %v192
        %285 = vmatmul.f32.gmra.mxu0 %v229
        %v286 = vpop.f32.mrf.mxu0
        %v287 = vadd.f32 %v210, %v286
        %288 = vmatmul.f32.gmra.mxu0 %v232
        %v289 = vpop.f32.mrf.mxu0
        %v290 = vadd.f32 %v215, %v289
        %291 = vmatmul.f32.gmra.mxu0 %v235
        %v292 = vpop.f32.mrf.mxu0
        %v293 = vadd.f32 %v220, %v292
        %294 = vmatmul.f32.gmra.mxu0 %v238
        %v295 = vpop.f32.mrf.mxu0
        %v296 = vadd.f32 %v225, %v295
        %297 = vdwg.mxu0
        %v298 = vadd.f32 %v258, %v191
        %v299 = vadd.f32 %v287, %v192
        %v300 = vadd.f32 %v261, %v193
        %v301 = vadd.f32 %v290, %v194
        %v302 = vadd.f32 %v264, %v195
        %v303 = vadd.f32 %v293, %v196
        %v304 = vadd.f32 %v267, %v197
        %v305 = vadd.f32 %v296, %v198
        %306 = vst [vmem:[%s190] sm:$0xff] %v298
        %307 = vst [vmem:[%s190 + $0x8] sm:$0xff] %v299
        %308 = vst [vmem:[%s190 + $0x10] sm:$0xff] %v300
        %309 = vst [vmem:[%s190 + $0x18] sm:$0xff] %v301
        %310 = vst [vmem:[%s190 + $0x20] sm:$0xff] %v302
        %311 = vst [vmem:[%s190 + $0x28] sm:$0xff] %v303
        %312 = vst [vmem:[%s190 + $0x30] sm:$0xff] %v304
        %313 = vst [vmem:[%s190 + $0x38] sm:$0xff] %v305
        %s314 = sand.u32 %s96, 1
        %s315 = scalar_lea.sflag [#allocation4], %s314
        %s316 = sand.u32 %s96, 1
        %s317 = smul.addr %s316, 64
        %s318 = scalar_lea.vmem [#allocation5], %s317
        // Predicated region
        $region37: #{tpu_custom_call.1} parent=31 // pred_check
          %p319 = pneg %p106
        $region38: #{tpu_custom_call.1} parent=31 // pred_check_branch
          %321 = sbr.rel (%p319) target = $region40
        $region39: #{tpu_custom_call.1} parent=31 // pred_region
          %323 = vsyncadd %s315, 0
          %s324 = smul.addr %s20, 8
          %s325 = smul.addr %s324, 8
          %s326 = scalar_lea.hbm %s3, %s325
          %s327 = sshll.u32 %s318, 4
          %s328 = int_to_ptr.vmem [resolvable:$true] %s327
          %s329 = sshll.u32 %s326, 4
          %s330 = int_to_ptr.hbm [resolvable:$true] %s329
          %335 = dma.vmem_to_hbm [thread:$0]  %s328, 1024, %s330, %s315, 256, 256, 16
        $region40: #{tpu_custom_call.1} parent=31 // pred_fallthru
          _
      $region32: #{tpu_custom_call.1} parent=5 // pred_fallthru
        _
      %p336 = scmp.le.s32.totalorder 2, %s15
      // Predicated region
      $region41: #{tpu_custom_call.1} parent=5 // pred_check
        %p337 = pneg %p336
      $region42: #{tpu_custom_call.1} parent=5 // pred_check_branch
        %339 = sbr.rel (%p337) target = $region44
      $region43: #{tpu_custom_call.1} parent=5 // pred_region
        %s340 = ssub.s32 %s15, 2
        // Predicated region
        $region45: #{tpu_custom_call.1} parent=43 // pred_check
          %p341 = pneg %p112
        $region46: #{tpu_custom_call.1} parent=43 // pred_check_branch
          %343 = sbr.rel (%p341) target = $region48
        $region47: #{tpu_custom_call.1} parent=43 // pred_region
          %s344 = sand.u32 %s97, 1
          %s345 = scalar_lea.sflag [#allocation4], %s344
          %s346 = sand.u32 %s97, 1
          %s347 = smul.addr %s346, 64
          %s348 = scalar_lea.vmem [#allocation5], %s347
          %350 = dma.done %s345, 1024
        $region48: #{tpu_custom_call.1} parent=43 // pred_fallthru
          _
      $region44: #{tpu_custom_call.1} parent=5 // pred_fallthru
        _
    $region6: #{tpu_custom_call.1} parent=1 // loop_footer
      %s19 = sadd.s32 1, %s15
    $region7: #{tpu_custom_call.1} parent=1 // loop_footer_branch
      %14 = sbr.rel target = $region3
    $region8: #{tpu_custom_call.1} parent=1 // loop_exit
      _
    %351 = vsyncpa [#allocation3], 1
    %s352 = scalar_lea.sflag [#allocation3], 1
    %353 = vsyncpa %s352, 1
    %354 = vsyncpa [#allocation4], 1
    %s355 = scalar_lea.sflag [#allocation4], 1
    %356 = vsyncpa %s355, 1

</llo_original>
